<compile_context>
chip_gen: v6e
topology: v6e:2x2x1
jax: 0.10.0
libtpu: 0.0.40
codegen_flags: <defaults>
</compile_context>

<pallas_src>
import functools

import jax
import jax.numpy as jnp
from jax import lax
from jax.experimental import pallas as pl
from jax.experimental.pallas import tpu as pltpu


def _round_up(x, m):
    return ((x + m - 1) // m) * m


def _correctness_loss_kernel(logits_ref, targets_ref, conf_ref, out_ref, *,
                             target_type, threshold, batch_size, block_b,
                             compute_dtype):
    """One batch tile: writes the tile's (unnormalized) partial loss sum."""
    tile = pl.program_id(0)

    logits = logits_ref[...].astype(compute_dtype)     # (TB, A)
    targets = targets_ref[...].astype(compute_dtype)   # (TB, A)
    conf = conf_ref[...].astype(jnp.float32)            # (TB, 2) - tiny, always f32
    TB, A = logits.shape

    col = lax.broadcasted_iota(jnp.int32, (TB, A), 1)
    col2 = lax.broadcasted_iota(jnp.int32, (TB, 2), 1)
    row = tile * block_b + lax.broadcasted_iota(jnp.int32, (TB, 1), 0)
    valid = row < batch_size                             # (TB, 1) ragged-tail mask

    # argmax of _masked_unk_softmax(logits) == argmax of logits with column 0
    # masked to -inf (softmax is monotonic; renormalizations are positive
    # per-row scalars), so no exp / sums / divides are needed for pred_inds.
    neg_inf = jnp.asarray(-jnp.inf, dtype=compute_dtype)
    masked = jnp.where(col == 0, neg_inf, logits)
    mmax = jnp.max(masked, axis=1, keepdims=True)
    pred_inds = jnp.min(jnp.where(masked == mmax, col, A), axis=1,
                        keepdims=True)                   # (TB, 1) first-max index

    def cross_entropy_sum(labels_int):                   # labels_int: (TB, 1) in {0,1}
        # CrossEntropyLoss(weight=[1,1]) numerator: sum_b -log_softmax(conf)[b, y_b]
        cmax = jnp.max(conf, axis=1, keepdims=True)
        lse = cmax + jnp.log(jnp.sum(jnp.exp(conf - cmax), axis=1, keepdims=True))
        logp = conf - lse                                 # (TB, 2)
        per_b = -jnp.sum(jnp.where(col2 == labels_int, logp, 0.0),
                         axis=1, keepdims=True)           # (TB, 1)
        return jnp.sum(jnp.where(valid, per_b, 0.0))

    if target_type == 'max_ind':
        t_max = jnp.max(targets, axis=1, keepdims=True)
        tgt_inds = jnp.min(jnp.where(targets == t_max, col, A), axis=1,
                           keepdims=True)
        labels = (pred_inds == tgt_inds).astype(jnp.int32)
        partial = cross_entropy_sum(labels)
    else:
        # one-hot select is exact in bf16 (0/1 mask times existing elements).
        one_hots = (col == pred_inds).astype(compute_dtype)               # (TB, A)
        tgt_scores = jnp.sum(one_hots * targets, axis=1,
                             keepdims=True).astype(jnp.float32)           # (TB, 1)
        if 'regress' in target_type:
            # correctness = cat([1 - s, s], dim=-1)  -> (TB, 2)
            correctness = jnp.where(col2 == 1, tgt_scores, 1.0 - tgt_scores)
            if target_type == 'regress_bce':
                # BCELoss elementwise; torch clamps log at -100.
                log_p = jnp.maximum(jnp.log(conf), -100.0)
                log_1mp = jnp.maximum(jnp.log(1.0 - conf), -100.0)
                elems = -(correctness * log_p + (1.0 - correctness) * log_1mp)
            elif target_type == 'regress_mse':
                diff = conf - correctness
                elems = diff * diff
            else:  # 'regress_l1'
                elems = jnp.abs(conf - correctness)
            partial = jnp.sum(jnp.where(valid, elems, 0.0))
        else:  # 'threshold'
            labels = (tgt_scores >= threshold).astype(jnp.int32)
            partial = cross_entropy_sum(labels)

    # Lane-dense (1, 8, 128) f32 block: single unmasked vreg store per tile.
    out_ref[...] = jnp.full(out_ref.shape, partial, dtype=jnp.float32)


def _tpu_memory_policy():
    """Generation-aware VMEM budgeting.

    Heuristic: physical VMEM <= 64 MiB => v7x-class part (2 TensorCores, fast
    HBM, small VMEM); 128 MiB => v5e/v6e (1 TensorCore)."""
    try:
        vmem_cap = int(pltpu.get_tpu_info().vmem_capacity_bytes)
    except Exception:
        vmem_cap = 64 << 20   # conservative fallback (works on every part)
    if vmem_cap <= (64 << 20):
        return dict(tile_budget_bytes=6 << 20,    # per input array per tile
                    vmem_limit_bytes=44 << 20,    # leave compiler-scratch headroom
                    min_tiles=2)                  # keep both TCs busy ("parallel")
    return dict(tile_budget_bytes=12 << 20,
                vmem_limit_bytes=80 << 20,        # > 32 MiB scoped default, < 128 MiB
                min_tiles=1)


def _bf16_compute_ok():
    """bf16 VALU exists on v6e/v7x; v5-and-older parts need the f32 upcast."""
    try:
        kind = jax.devices()[0].device_kind.lower()
    except Exception:
        return False
    return all(tag not in kind for tag in ('v2', 'v3', 'v4', 'v5'))


def _pick_block_b(batch, answers, itemsize, *, tile_budget_bytes,
                  max_block_b=2048, min_tiles=1):
    """Batch-tile size: multiple of the sublane packing unit, capped so
    double-buffered inputs (2 arrays x 2 buffers x TB*A*itemsize) stay inside
    the generation's VMEM budget."""
    itemsize = max(int(itemsize), 1)
    sub_unit = max(8, 8 * (4 // itemsize))   # f32 -> 8, bf16 -> 16, int8 -> 32
    tb = _round_up(max_block_b, sub_unit)
    while tb > sub_unit and tb * answers * itemsize > tile_budget_bytes:
        tb //= 2
    tb = max(tb, sub_unit)
    if min_tiles > 1 and batch >= min_tiles * sub_unit:
        # Guarantee >= min_tiles grid steps so every TensorCore gets work.
        tb = min(tb, _round_up(pl.cdiv(batch, min_tiles), sub_unit))
    if batch <= tb:
        return batch          # single full-array block (always a valid block)
    return tb


def correctness_prediction_loss(logits, targets, confidences, *,
                                target_type='threshold', acc_threshold=0.5,
                                block_b=None):
    """Pallas implementation of CorrectnessPredictionLoss.forward."""
    assert target_type in ('threshold', 'max_ind', 'regress_bce',
                           'regress_mse', 'regress_l1')
    if logits.ndim == 3:
        logits = logits[:, 0]
    B, A = logits.shape

    policy = _tpu_memory_policy()
    itemsize = max(jnp.dtype(logits.dtype).itemsize,
                   jnp.dtype(targets.dtype).itemsize)
    if block_b is None:
        block_b = _pick_block_b(B, A, itemsize,
                                tile_budget_bytes=policy['tile_budget_bytes'],
                                min_tiles=policy['min_tiles'])
    num_tiles = pl.cdiv(B, block_b)

    # Stay in bf16 through the compare/select chain on bf16-VPU parts; upcast
    # to f32 otherwise.
    if (logits.dtype == jnp.bfloat16 and targets.dtype == jnp.bfloat16
            and _bf16_compute_ok()):
        compute_dtype = jnp.bfloat16
    else:
        compute_dtype = jnp.float32

    kernel = functools.partial(_correctness_loss_kernel,
                               target_type=target_type,
                               threshold=acc_threshold,
                               batch_size=B,
                               block_b=block_b,
                               compute_dtype=compute_dtype)

    grid_spec = pltpu.PrefetchScalarGridSpec(
        num_scalar_prefetch=0,
        grid=(num_tiles,),
        in_specs=[
            pl.BlockSpec((block_b, A), lambda i: (i, 0)),
            pl.BlockSpec((block_b, A), lambda i: (i, 0)),
            pl.BlockSpec((block_b, 2), lambda i: (i, 0)),
        ],
        out_specs=pl.BlockSpec((1, 8, 128), lambda i: (i, 0, 0)),
    )
    partials = pl.pallas_call(
        kernel,
        out_shape=jax.ShapeDtypeStruct((num_tiles, 8, 128), jnp.float32),
        grid_spec=grid_spec,
        compiler_params=pltpu.CompilerParams(
            # Independent batch tiles -> shardable across v7x's two TensorCores.
            dimension_semantics=("parallel",),
            vmem_limit_bytes=policy['vmem_limit_bytes']),
    )(logits, targets, confidences)

    total = jnp.sum(partials[:, 0, 0])
    if target_type in ('regress_mse', 'regress_l1'):
        return total / (B * 2)
    # threshold / max_ind: CE(weight=[1,1], mean)          -> sum / B
    # regress_bce:         BCE(mean) * correctness.size(1) -> sum / (B*2) * 2
    return total / B


def _reference_loss(logits, targets, confidences, target_type, t=0.5):
    """Plain-JAX mirror of the torch forward, for verification."""
    if logits.ndim == 3:
        logits = logits[:, 0]
    logits = logits.astype(jnp.float32)
    targets = targets.astype(jnp.float32)
    confidences = confidences.astype(jnp.float32)
    x1 = jax.nn.softmax(logits, axis=1)
    x1 = x1.at[:, 0].set(0.0)
    y = x1 / jnp.sum(x1, axis=1, keepdims=True)
    pred_inds = jnp.argmax(y, axis=1)
    B = logits.shape[0]
    if target_type == 'max_ind':
        tgt_inds = jnp.argmax(targets, axis=1)
        labels = (pred_inds == tgt_inds).astype(jnp.int32)
        logp = jax.nn.log_softmax(confidences, axis=1)
        return -jnp.mean(logp[jnp.arange(B), labels])
    tgt_scores = targets[jnp.arange(B), pred_inds]
    if 'regress' in target_type:
        s = tgt_scores[:, None]
        correctness = jnp.concatenate([1.0 - s, s], axis=-1)
        if target_type == 'regress_bce':
            lp = jnp.maximum(jnp.log(confidences), -100.0)
            l1mp = jnp.maximum(jnp.log(1.0 - confidences), -100.0)
            return jnp.mean(-(correctness * lp + (1 - correctness) * l1mp)) * 2
        if target_type == 'regress_mse':
            return jnp.mean((confidences - correctness) ** 2)
        return jnp.mean(jnp.abs(confidences - correctness))
    labels = (tgt_scores >= t).astype(jnp.int32)
    logp = jax.nn.log_softmax(confidences, axis=1)
    return -jnp.mean(logp[jnp.arange(B), labels])


if __name__ == "__main__":
    key = jax.random.PRNGKey(0)

    def make_inputs(B, A, key, dtype=jnp.float32):
        k1, k2, k3 = jax.random.split(key, 3)
        logits = jax.random.normal(k1, (B, A), dtype=jnp.float32).astype(dtype)
        targets = jax.random.uniform(k2, (B, A), dtype=jnp.float32).astype(dtype)
        conf_logits = jax.random.normal(k3, (B, 2), dtype=jnp.float32)
        conf_probs = jax.nn.softmax(conf_logits, axis=-1)   # valid probs for BCE/regress
        return logits, targets, conf_logits, conf_probs

    cases = ['threshold', 'max_ind', 'regress_bce', 'regress_mse', 'regress_l1']

    # Case 1: small single-tile (or auto-split on v7x) batch, f32.
    logits, targets, conf_logits, conf_probs = make_inputs(8, 32, key)
    for tt in cases:
        conf = conf_probs if 'regress' in tt else conf_logits
        loss = correctness_prediction_loss(
            logits, targets, conf, target_type=tt, acc_threshold=0.5)
        jax.block_until_ready(loss)
        ref = _reference_loss(logits, targets, conf, tt, 0.5)
        assert jnp.allclose(loss, ref, rtol=1e-5, atol=1e-5), (tt, loss, ref)

    # Case 2: multi-tile batch with a ragged last tile (B=20, block_b=8), f32.
    logits, targets, conf_logits, conf_probs = make_inputs(20, 32,
                                                           jax.random.PRNGKey(1))
    for tt in cases:
        conf = conf_probs if 'regress' in tt else conf_logits
        loss = correctness_prediction_loss(
            logits, targets, conf, target_type=tt, acc_threshold=0.5, block_b=8)
        jax.block_until_ready(loss)
        ref = _reference_loss(logits, targets, conf, tt, 0.5)
        assert jnp.allclose(loss, ref, rtol=1e-5, atol=1e-5), (tt, loss, ref)

    # Case 3: auto tiling, bf16 inputs (halved HBM traffic; bf16 compute on
    # v6e/v7x, f32 upcast on v5-class parts).
    logits, targets, conf_logits, conf_probs = make_inputs(
        48, 128, jax.random.PRNGKey(2), dtype=jnp.bfloat16)
    for tt in cases:
        conf = conf_probs if 'regress' in tt else conf_logits
        loss = correctness_prediction_loss(
            logits, targets, conf, target_type=tt, acc_threshold=0.5)
        jax.block_until_ready(loss)
        ref = _reference_loss(logits, targets, conf, tt, 0.5)
        assert jnp.allclose(loss, ref, rtol=1e-4, atol=1e-4), (tt, loss, ref)

    print("KERNEL_OK")
</pallas_src>

<mosaic_0001>
module attributes {stable_mosaic.version = 11 : i64} {
  func.func @_correctness_loss_kernel(%arg0: i32, %arg1: memref<8x32xf32, #tpu.memory_space<vmem>>, %arg2: memref<8x32xf32, #tpu.memory_space<vmem>>, %arg3: memref<8x2xf32, #tpu.memory_space<vmem>>, %arg4: memref<1x8x128xf32, #tpu.memory_space<vmem>>) attributes {dimension_semantics = [#tpu.dimension_semantics<parallel>], iteration_bounds = array<i64: 1>, scalar_prefetch = 0 : i64, scratch_operands = 0 : i64, tpu.core_type = #tpu.core_type<tc>, window_params = [{transform_indices = @transform_0, window_bounds = array<i64: 8, 32>}, {transform_indices = @transform_1, window_bounds = array<i64: 8, 32>}, {transform_indices = @transform_2, window_bounds = array<i64: 8, 2>}, {transform_indices = @transform_3, window_bounds = array<i64: 1, 8, 128>}]} {
    %c0 = arith.constant 0 : index
    %c0_0 = arith.constant 0 : index
    %0 = vector.load %arg1[%c0, %c0_0] : memref<8x32xf32, #tpu.memory_space<vmem>>, vector<8x32xf32>
    %c0_1 = arith.constant 0 : index
    %c0_2 = arith.constant 0 : index
    %1 = vector.load %arg2[%c0_1, %c0_2] : memref<8x32xf32, #tpu.memory_space<vmem>>, vector<8x32xf32>
    %c0_3 = arith.constant 0 : index
    %c0_4 = arith.constant 0 : index
    %2 = vector.load %arg3[%c0_3, %c0_4] : memref<8x2xf32, #tpu.memory_space<vmem>>, vector<8x2xf32>
    %3 = tpu.iota {dimensions = array<i32: 1>} : vector<8x32xi32>
    %4 = tpu.iota {dimensions = array<i32: 1>} : vector<8x2xi32>
    %c8_i32 = arith.constant 8 : i32
    %5 = arith.muli %arg0, %c8_i32 : i32
    %6 = tpu.iota {dimensions = array<i32: 0>} : vector<8x1xi32>
    %7 = vector.broadcast %5 : i32 to vector<8x1xi32>
    %8 = arith.addi %7, %6 : vector<8x1xi32>
    %c8_i32_5 = arith.constant 8 : i32
    %9 = vector.broadcast %c8_i32_5 : i32 to vector<8x1xi32>
    %10 = arith.cmpi slt, %8, %9 : vector<8x1xi32>
    %c0_i32 = arith.constant 0 : i32
    %11 = vector.broadcast %c0_i32 : i32 to vector<8x32xi32>
    %12 = arith.cmpi eq, %3, %11 : vector<8x32xi32>
    %cst = arith.constant 0xFF800000 : f32
    %13 = vector.broadcast %cst : f32 to vector<8x32xf32>
    %14 = arith.select %12, %13, %0 : vector<8x32xi1>, vector<8x32xf32>
    %cst_6 = arith.constant dense<0xFF800000> : vector<8xf32>
    %15 = vector.multi_reduction <maximumf>, %14, %cst_6 [1] : vector<8x32xf32> to vector<8xf32>
    %16 = vector.shape_cast %15 : vector<8xf32> to vector<8x1xf32>
    %17 = vector.broadcast %16 : vector<8x1xf32> to vector<8x32xf32>
    %18 = arith.cmpf oeq, %14, %17 : vector<8x32xf32>
    %c32_i32 = arith.constant 32 : i32
    %19 = vector.broadcast %c32_i32 : i32 to vector<8x32xi32>
    %20 = arith.select %18, %3, %19 : vector<8x32xi1>, vector<8x32xi32>
    %cst_7 = arith.constant dense<2147483647> : vector<8xi32>
    %21 = vector.multi_reduction <minsi>, %20, %cst_7 [1] : vector<8x32xi32> to vector<8xi32>
    %22 = vector.shape_cast %21 : vector<8xi32> to vector<8x1xi32>
    %23 = vector.broadcast %22 : vector<8x1xi32> to vector<8x32xi32>
    %24 = arith.cmpi eq, %3, %23 : vector<8x32xi32>
    %25 = arith.extui %24 : vector<8x32xi1> to vector<8x32xi32>
    %26 = arith.sitofp %25 : vector<8x32xi32> to vector<8x32xf32>
    %27 = arith.mulf %26, %1 : vector<8x32xf32>
    %cst_8 = arith.constant dense<0.000000e+00> : vector<8xf32>
    %28 = vector.multi_reduction <add>, %27, %cst_8 [1] : vector<8x32xf32> to vector<8xf32>
    %29 = vector.shape_cast %28 : vector<8xf32> to vector<8x1xf32>
    %cst_9 = arith.constant 5.000000e-01 : f32
    %30 = vector.broadcast %cst_9 : f32 to vector<8x1xf32>
    %31 = arith.cmpf oge, %29, %30 : vector<8x1xf32>
    %32 = arith.extui %31 : vector<8x1xi1> to vector<8x1xi32>
    %cst_10 = arith.constant dense<0xFF800000> : vector<8xf32>
    %33 = vector.multi_reduction <maximumf>, %2, %cst_10 [1] : vector<8x2xf32> to vector<8xf32>
    %34 = vector.shape_cast %33 : vector<8xf32> to vector<8x1xf32>
    %35 = vector.broadcast %34 : vector<8x1xf32> to vector<8x2xf32>
    %36 = arith.subf %2, %35 : vector<8x2xf32>
    %37 = math.exp %36 : vector<8x2xf32>
    %cst_11 = arith.constant dense<0.000000e+00> : vector<8xf32>
    %38 = vector.multi_reduction <add>, %37, %cst_11 [1] : vector<8x2xf32> to vector<8xf32>
    %39 = vector.shape_cast %38 : vector<8xf32> to vector<8x1xf32>
    %40 = math.log %39 : vector<8x1xf32>
    %41 = arith.addf %34, %40 : vector<8x1xf32>
    %42 = vector.broadcast %41 : vector<8x1xf32> to vector<8x2xf32>
    %43 = arith.subf %2, %42 : vector<8x2xf32>
    %44 = vector.broadcast %32 : vector<8x1xi32> to vector<8x2xi32>
    %45 = arith.cmpi eq, %4, %44 : vector<8x2xi32>
    %cst_12 = arith.constant 0.000000e+00 : f32
    %46 = vector.broadcast %cst_12 : f32 to vector<8x2xf32>
    %47 = arith.select %45, %43, %46 : vector<8x2xi1>, vector<8x2xf32>
    %cst_13 = arith.constant dense<0.000000e+00> : vector<8xf32>
    %48 = vector.multi_reduction <add>, %47, %cst_13 [1] : vector<8x2xf32> to vector<8xf32>
    %49 = vector.shape_cast %48 : vector<8xf32> to vector<8x1xf32>
    %cst_14 = arith.constant 0.000000e+00 : f32
    %50 = vector.broadcast %cst_14 : f32 to vector<8x1xf32>
    %51 = arith.subf %50, %49 : vector<8x1xf32>
    %cst_15 = arith.constant 0.000000e+00 : f32
    %52 = vector.broadcast %cst_15 : f32 to vector<8x1xf32>
    %53 = arith.select %10, %51, %52 : vector<8x1xi1>, vector<8x1xf32>
    %54 = vector.shape_cast %53 : vector<8x1xf32> to vector<1x8x1xf32>
    %cst_16 = arith.constant dense<0.000000e+00> : vector<1xf32>
    %55 = vector.multi_reduction <add>, %54, %cst_16 [1, 2] : vector<1x8x1xf32> to vector<1xf32>
    %56 = vector.shape_cast %55 : vector<1xf32> to vector<1x1x1xf32>
    %57 = vector.extract %56[0, 0, 0] : f32 from vector<1x1x1xf32>
    %58 = vector.broadcast %57 : f32 to vector<1x8x128xf32>
    %c0_17 = arith.constant 0 : index
    %c0_18 = arith.constant 0 : index
    %c0_19 = arith.constant 0 : index
    %59 = vector.load %arg4[%c0_17, %c0_18, %c0_19] : memref<1x8x128xf32, #tpu.memory_space<vmem>>, vector<1x8x128xf32>
    tpu.vector_store %arg4[%c0_17, %c0_18, %c0_19], %58 {strides = array<i32>} : memref<1x8x128xf32, #tpu.memory_space<vmem>>, vector<1x8x128xf32>,
    return
  }
  func.func @transform_0(%arg0: i32) -> (i32, i32) {
    %c0_i32 = arith.constant 0 : i32
    %c0_i32_0 = arith.constant 0 : i32
    return %arg0, %c0_i32 : i32, i32
  }
  func.func @transform_1(%arg0: i32) -> (i32, i32) {
    %c0_i32 = arith.constant 0 : i32
    %c0_i32_0 = arith.constant 0 : i32
    return %arg0, %c0_i32 : i32, i32
  }
  func.func @transform_2(%arg0: i32) -> (i32, i32) {
    %c0_i32 = arith.constant 0 : i32
    %c0_i32_0 = arith.constant 0 : i32
    return %arg0, %c0_i32 : i32, i32
  }
  func.func @transform_3(%arg0: i32) -> (i32, i32, i32) {
    %c0_i32 = arith.constant 0 : i32
    %c0_i32_0 = arith.constant 0 : i32
    %c0_i32_1 = arith.constant 0 : i32
    return %arg0, %c0_i32, %c0_i32_0 : i32, i32, i32
  }
}

</mosaic_0001>

<llo_original>
// kernel: tpu_custom_call.1
$region0: #{tpu_custom_call.1}
  #allocation0 [shape = 'u32[]', space=smem, size = 0x4, offset = 0x4, fixed_abs, tag = 'smem constant byte address 0x4 - core index']
  #allocation1 [shape = 'u32[144,128]{1,0:T(1,128)}', space=vmem, size = 0x12000, scoped, tag = 'internal scratch']
  %s0 = inlined_call_operand.vmem [shape: f32[8,32], index: 0, kind: input, shape index: {}]
  %s1 = inlined_call_operand.hbm [shape: f32[8,32], index: 1, kind: input, shape index: {}]
  %s2 = inlined_call_operand.vmem [shape: f32[8,2], index: 2, kind: input, shape index: {}]
  %s3 = inlined_call_operand.hbm [shape: f32[1,8,128], index: 3, kind: output, shape index: {}]
  %s4 = sld [smem:[#allocation0]]
  $region26: #{tpu_custom_call.1} parent=0
    _
  %s6 = ssub.s32 1, %s4
  %s7 = scalar_select 0, %s6, %s4
  $region1: #{tpu_custom_call.1} parent=0
    #allocation2 [shape = 'u8[4096]{0}', space=vmem, size = 0x1000, scoped, tag = 'input window, operand 1, single buffered']
    #allocation3 [shape = 's32[1]{0}', space=sflag, size = 0x4, scoped, tag = 'scoped memory for tpu_custom_call.1']
    #allocation4 [shape = 's32[1]{0}', space=sflag, size = 0x4, scoped, tag = 'scoped memory for tpu_custom_call.1']
    #allocation5 [shape = 'u8[4096]{0}', space=vmem, size = 0x1000, scoped, tag = 'output window, operand 0, single buffered']
    %8 = vsyncpa [#allocation3], 0
    %9 = vsyncpa [#allocation4], 0
    // Predicated region
    $region2: #{tpu_custom_call.1} parent=1 // pred_check
      _
    $region3: #{tpu_custom_call.1} parent=1 // pred_check_branch
      %11 = sbr.rel (0) target = $region5
    $region4: #{tpu_custom_call.1} parent=1 // pred_region
      _
    $region5: #{tpu_custom_call.1} parent=1 // pred_fallthru
      _
    // Predicated region
    $region6: #{tpu_custom_call.1} parent=1 // pred_check
      _
    $region7: #{tpu_custom_call.1} parent=1 // pred_check_branch
      %13 = sbr.rel (0) target = $region9
    $region8: #{tpu_custom_call.1} parent=1 // pred_region
      %s15 = ssub.s32 128, 128
      %16 = vsyncadd [#allocation3], %s15
      %s18 = sshll.u32 [#allocation2], 4
      %s19 = int_to_ptr.vmem [resolvable:$true] %s18
      %21 = dma.hbm_to_vmem [thread:$0]  %s1, 128, %s19, [#allocation3]
    $region9: #{tpu_custom_call.1} parent=1 // pred_fallthru
      _
    // Predicated region
    $region10: #{tpu_custom_call.1} parent=1 // pred_check
      _
    $region11: #{tpu_custom_call.1} parent=1 // pred_check_branch
      %23 = sbr.rel (0) target = $region13
    $region12: #{tpu_custom_call.1} parent=1 // pred_region
      _
    $region13: #{tpu_custom_call.1} parent=1 // pred_fallthru
      _
    // Predicated region
    $region14: #{tpu_custom_call.1} parent=1 // pred_check
      _
    $region15: #{tpu_custom_call.1} parent=1 // pred_check_branch
      %25 = sbr.rel (0) target = $region17
    $region16: #{tpu_custom_call.1} parent=1 // pred_region
      %26 = dma.done [#allocation3], 128
    $region17: #{tpu_custom_call.1} parent=1 // pred_fallthru
      _
    %v27 = vld [vmem:[%s0] sm:$0xff]
    %v28 = vld [vmem:[#allocation2] sm:$0xff]
    %v29 = vld [vmem:[%s2] sm:$0xff]
    %v30 = vlaneseq
    %v31 = vand.u32 %v30, 127
    %s32 = smul.u32 0, 8
    %v33 = vlaneseq
    %v34 = vshrl.u32 %v33, 7
    %v35 = vstv %s32
    %v36 = vadd.s32 %v35, %v34
    %vm37 = vcmp.lt.s32.totalorder %v36, 8
    %vm38 = vcmp.eq.s32.totalorder %v31, 0
    %v39 = vsel %vm38, -inf, %v27
    %vm40 = vcmask 261120
    %v41 = vsel %vm40, %v39, -inf
    %42 = vmax.xlane.f32.xlu0 %v41
    %v43 = vpop.xlane.xlu0 %42
    %vm44 = vcmp.eq.f32.partialorder %v39, %v43
    %v45 = vsel %vm44, %v31, 32
    %v46 = vsel %vm40, %v45, 2147483647
    %v47 = vand.u32 %v46, 65535
    %v48 = vshra.s32 %v46, 16
    %v49 = vcvt.s32.f32 %v47
    %v50 = vcvt.s32.f32 %v48
    %51 = vmin.xlane.f32.xlu0 %v50
    %v52 = vpop.xlane.xlu0 %51
    %vm53 = vcmp.eq.f32.partialorder %v50, %v52
    %v54 = vsel %vm53, %v49, inf
    %55 = vmin.xlane.f32.xlu0 %v54
    %v56 = vpop.xlane.xlu0 %55
    %v57 = vcvt.f32.s32 %v56
    %v58 = vcvt.f32.s32 %v52
    %v59 = vshll.u32 %v58, 16
    %v60 = vadd.s32 %v59, %v57
    %vm61 = vcmp.eq.s32.totalorder %v31, %v60
    %v62 = vsel %vm61, 1, 0
    %v63 = vcvt.s32.f32 %v62
    %v64 = vmul.f32 %v63, %v28
    %v65 = vsel %vm40, %v64, 0.0
    %66 = vadd.xlane.f32.xlu0 %v65
    %v67 = vpop.xlane.xlu0 %66
    %vm68 = vcmp.ge.f32.partialorder %v67, 0.5
    %v69 = vsel %vm68, 1, 0
    %vm70 = vcmask 15360
    %v71 = vsel %vm70, %v29, -inf
    %72 = vmax.xlane.f32.xlu0 %v71
    %v73 = vpop.xlane.xlu0 %72
    %v74 = vsub.f32 %v29, %v73
    %v75 = vmul.f32 %v74, 1.442695
    %v76 = vpow.pop %v75
    %v77 = vsel %vm70, %v76, 0.0
    %78 = vadd.xlane.f32.xlu0 %v77
    %v79 = vpop.xlane.xlu0 %78
    %v80 = vlog2.pop %v79
    %v81 = vmul.f32 %v80, 0.6931472
    %v82 = vadd.f32 %v73, %v81
    %v83 = vsub.f32 %v29, %v82
    %vm84 = vcmp.eq.s32.totalorder %v31, %v69
    %v85 = vsel %vm84, %v83, 0.0
    %v86 = vsel %vm70, %v85, 0.0
    %87 = vadd.xlane.f32.xlu0 %v86
    %v88 = vpop.xlane.xlu0 %87
    %v89 = vsub.f32 0.0, %v88
    %v90 = vsel %vm37, %v89, 0.0
    %vm91 = vcmask 7168
    %v92 = vsel %vm91, %v90, 0.0
    %93 = vadd.xlane.f32.xlu0 %v92
    %v94 = vpop.xlane.xlu0 %93
    %v95 = vrot.slane %v94, 4
    %v96 = vadd.f32 %v94, %v95
    %v97 = vrot.slane %v96, 2
    %v98 = vadd.f32 %v96, %v97
    %v99 = vrot.slane %v98, 1
    %v100 = vadd.f32 %v98, %v99
    %s101 = vtos %v100
    %v102 = vstv %s101
    %103 = vst [vmem:[#allocation5] sm:$0xff] %v102
    // Predicated region
    $region18: #{tpu_custom_call.1} parent=1 // pred_check
      _
    $region19: #{tpu_custom_call.1} parent=1 // pred_check_branch
      %105 = sbr.rel (0) target = $region21
    $region20: #{tpu_custom_call.1} parent=1 // pred_region
      %s107 = ssub.s32 128, 128
      %108 = vsyncadd [#allocation4], %s107
      %s110 = sshll.u32 [#allocation5], 4
      %s111 = int_to_ptr.vmem [resolvable:$true] %s110
      %113 = dma.vmem_to_hbm [thread:$0]  %s111, 128, %s3, [#allocation4]
    $region21: #{tpu_custom_call.1} parent=1 // pred_fallthru
      _
    // Predicated region
    $region22: #{tpu_custom_call.1} parent=1 // pred_check
      _
    $region23: #{tpu_custom_call.1} parent=1 // pred_check_branch
      %115 = sbr.rel (0) target = $region25
    $region24: #{tpu_custom_call.1} parent=1 // pred_region
      %116 = dma.done [#allocation4], 128
    $region25: #{tpu_custom_call.1} parent=1 // pred_fallthru
      _
    %117 = vsyncpa [#allocation3], 1
    %118 = vsyncpa [#allocation4], 1

</llo_original>
